<compile_context>
chip_gen: v6e
topology: v6e:2x2x1
jax: 0.10.0
libtpu: 0.0.40
codegen_flags: <defaults>
</compile_context>

<pallas_src>
import functools

import jax
import jax.numpy as jnp
from jax import lax
from jax.experimental import pallas as pl
from jax.experimental.pallas import tpu as pltpu

EPS = 1e-5
LANE = 128


def _round_up(v, m):
    return (v + m - 1) // m * m


# ---------------------------------------------------------------------------
# Kernels.  One pallas_call per matmul layer; BN is two-phase (per-tile
# partial stats produced here, folded into scale/shift between the calls).
# ---------------------------------------------------------------------------

def _partial_stats(h, n_rows, block_rows):
    """Per-tile (sum, sum-of-squares) over valid rows -> (1, 2, D) f32."""
    if n_rows % block_rows != 0:                 # ragged last tile: mask pad rows
        row = (lax.broadcasted_iota(jnp.int32, (block_rows, 1), 0)
               + pl.program_id(0) * block_rows)
        h = jnp.where(row < n_rows, h, 0.0)
    s1 = jnp.sum(h, axis=0, keepdims=True)
    s2 = jnp.sum(h * h, axis=0, keepdims=True)
    return jnp.concatenate([s1, s2], axis=0)[None]


def _layer1_kernel(x_ref, w1s_ref, bs_ref, h1_ref, sc_ref, st_ref, *,
                   d_pad, n_rows, block_rows):
    """Fused x @ [W1 | Ws]; emits layer-1 pre-BN activations, the shortcut
    branch and BN1 partial stats."""
    x = x_ref[...].astype(w1s_ref.dtype)          # cast in VMEM (no HBM copy of x)
    y = jnp.dot(x, w1s_ref[...], preferred_element_type=jnp.float32)
    h = y[:, :d_pad]                              # fcs layer-1 pre-act (b1 dead under BN)
    sc_ref[...] = y[:, d_pad:] + bs_ref[...]      # shortcut -> HBM immediately
    st_ref[...] = _partial_stats(h, n_rows, block_rows)
    h1_ref[...] = h.astype(h1_ref.dtype)


def _layer2_kernel(h1_ref, w2_ref, scale1_ref, shift1_ref, a_ref,
                   h2_ref, st_ref, *, n_rows, block_rows):
    """BN1 (folded scale/shift) + PReLU + Linear2; emits BN2 partial stats."""
    h = h1_ref[...]
    h = h * scale1_ref[...] + shift1_ref[...]     # elementwise in compute dtype
    a1 = a_ref[0].astype(h.dtype)
    h = jnp.where(h >= 0, h, a1 * h)
    y = jnp.dot(h, w2_ref[...], preferred_element_type=jnp.float32)
    st_ref[...] = _partial_stats(y, n_rows, block_rows)
    h2_ref[...] = y.astype(h2_ref.dtype)


def _layer3_kernel(h2_ref, w3_ref, b3_ref, scale2_ref, shift2_ref, sc_ref,
                   a_ref, o_ref):
    """BN2 + PReLU + Linear3 + PReLU; shortcut add fused into the epilogue."""
    h = h2_ref[...]
    h = h * scale2_ref[...] + shift2_ref[...]
    a2 = a_ref[1].astype(h.dtype)
    h = jnp.where(h >= 0, h, a2 * h)
    y = jnp.dot(h, w3_ref[...], preferred_element_type=jnp.float32) + b3_ref[...]
    a3 = a_ref[2]                                 # f32, matches y
    y = jnp.where(y >= 0, y, a3 * y)
    o_ref[...] = (y + sc_ref[...]).astype(o_ref.dtype)


# ---------------------------------------------------------------------------
# Wrapper.
# ---------------------------------------------------------------------------

def prepare_params(params, compute_dtype=jnp.bfloat16):
    """Pad feature dims to a multiple of 128, fuse [W1 | Ws] and cast — ONCE.
    Cache the returned dict; mlp_forward does no per-call weight work."""
    out_dim = params["w1"].shape[1]
    d_pad = _round_up(out_dim, LANE)
    f32 = jnp.float32

    def padc(a):                                  # zero-pad feature (last) axis
        return jnp.pad(a, ((0, 0), (0, d_pad - a.shape[1])))

    def pad2(a):                                  # zero-pad both axes of (out,out)
        return jnp.pad(a, ((0, d_pad - a.shape[0]), (0, d_pad - a.shape[1])))

    return {
        # layer-1 weight fused with the shortcut weight: one MXU pass over x.
        "w1s": jnp.concatenate([padc(params["w1"]), padc(params["ws"])],
                               axis=1).astype(compute_dtype),
        "w2": pad2(params["w2"]).astype(compute_dtype),
        "w3": pad2(params["w3"]).astype(compute_dtype),
        "b3": padc(params["b3"]).astype(f32),
        "bs": padc(params["bs"]).astype(f32),
        "g1": padc(params["g1"]).astype(f32),
        "be1": padc(params["be1"]).astype(f32),
        "g2": padc(params["g2"]).astype(f32),
        "be2": padc(params["be2"]).astype(f32),
        "a": jnp.concatenate([params["a1"].reshape(-1),
                              params["a2"].reshape(-1),
                              params["a3"].reshape(-1)]).astype(f32),
    }


def _fold_bn(partial_stats, n_rows, gamma, beta, ew_dtype):
    """Reduce per-tile (sum, sumsq) partials into a folded BN scale/shift."""
    s = jnp.sum(partial_stats, axis=0)                       # (2, d_pad) f32
    mean = s[0:1] / n_rows
    var = jnp.maximum(s[1:2] / n_rows - mean * mean, 0.0)    # clamp 1-pass var
    scale = gamma * lax.rsqrt(var + EPS)                     # rsqrt -> EUP
    shift = beta - mean * scale
    return scale.astype(ew_dtype), shift.astype(ew_dtype)


def _compiler_params(vmem_need_bytes):
    """Generation-aware VMEM budget (v7x: 64 MiB/TC vs 128 MiB on v5e/v6e)."""
    cap = 64 << 20                                           # conservative fallback
    try:
        cap = int(getattr(pltpu.get_tpu_info(), "vmem_capacity_bytes", cap))
    except Exception:
        pass
    limit = int(min(max(vmem_need_bytes, 16 << 20), cap * 3 // 4))
    return pltpu.CompilerParams(dimension_semantics=("parallel",),
                                vmem_limit_bytes=limit)


def mlp_forward(x, prepared, *, out_dim, block_rows=256):
    """x: (N, in_dim) f32.  prepared: output of prepare_params (cached).

    Streams row tiles of size `block_rows` through three pipelined kernels
    (layer1 + shortcut, layer2, layer3 + residual); BN stats are reduced from
    per-tile partials between the calls.  Returns (N, out_dim) f32.
    """
    n, in_dim = x.shape
    w1s, w2, w3 = prepared["w1s"], prepared["w2"], prepared["w3"]
    d_pad = w2.shape[0]
    cd = w2.dtype                                # MXU / elementwise compute dtype
    f32 = jnp.float32

    blk = max(8, min(_round_up(block_rows, 8), _round_up(n, 8)))
    nt = pl.cdiv(n, blk)

    itemsize = jnp.dtype(cd).itemsize
    cparams = _compiler_params(
        (w1s.size + w2.size + w3.size) * itemsize                        # resident weights
        + 2 * blk * (in_dim * 4 + d_pad * (2 * itemsize + 4 * 4))        # 2x-buffered tiles + f32 accs
        + (8 << 20))                                                     # headroom

    def row_spec(width):
        return pl.BlockSpec((blk, width), lambda i: (i, 0))

    def full_spec(arr):
        nd = arr.ndim
        return pl.BlockSpec(arr.shape, lambda i, nd=nd: (0,) * nd)

    stats_spec = pl.BlockSpec((1, 2, d_pad), lambda i: (i, 0, 0))
    smem_spec = pl.BlockSpec(memory_space=pltpu.MemorySpace.SMEM)

    # ---- layer 1 + shortcut (fused [W1|Ws] matmul) + BN1 partial stats -----
    h1, sc, st1 = pl.pallas_call(
        functools.partial(_layer1_kernel, d_pad=d_pad, n_rows=n, block_rows=blk),
        grid=(nt,),
        in_specs=[row_spec(in_dim), full_spec(w1s), full_spec(prepared["bs"])],
        out_specs=[row_spec(d_pad), row_spec(d_pad), stats_spec],
        out_shape=[jax.ShapeDtypeStruct((n, d_pad), cd),      # h1 (compute dtype)
                   jax.ShapeDtypeStruct((n, d_pad), f32),     # shortcut branch
                   jax.ShapeDtypeStruct((nt, 2, d_pad), f32)],
        compiler_params=cparams,
    )(x, w1s, prepared["bs"])

    scale1, shift1 = _fold_bn(st1, n, prepared["g1"], prepared["be1"], cd)

    # ---- BN1 + PReLU + layer 2 + BN2 partial stats --------------------------
    h2, st2 = pl.pallas_call(
        functools.partial(_layer2_kernel, n_rows=n, block_rows=blk),
        grid=(nt,),
        in_specs=[row_spec(d_pad), full_spec(w2), full_spec(scale1),
                  full_spec(shift1), smem_spec],
        out_specs=[row_spec(d_pad), stats_spec],
        out_shape=[jax.ShapeDtypeStruct((n, d_pad), cd),
                   jax.ShapeDtypeStruct((nt, 2, d_pad), f32)],
        compiler_params=cparams,
    )(h1, w2, scale1, shift1, prepared["a"])

    scale2, shift2 = _fold_bn(st2, n, prepared["g2"], prepared["be2"], cd)

    # ---- BN2 + PReLU + layer 3 + PReLU + residual add ------------------------
    out = pl.pallas_call(
        _layer3_kernel,
        grid=(nt,),
        in_specs=[row_spec(d_pad), full_spec(w3), full_spec(prepared["b3"]),
                  full_spec(scale2), full_spec(shift2), row_spec(d_pad),
                  smem_spec],
        out_specs=row_spec(d_pad),
        out_shape=jax.ShapeDtypeStruct((n, d_pad), f32),
        compiler_params=cparams,
    )(h2, w3, prepared["b3"], scale2, shift2, sc, prepared["a"])

    return out[:, :out_dim]


# ---------------------------------------------------------------------------
# Synthetic init + pure-JAX reference (mirrors PyTorch defaults / forward).
# ---------------------------------------------------------------------------

def init_params(key, in_dim, out_dim):
    """Linear: W, b ~ U(-1/sqrt(fan_in), 1/sqrt(fan_in)); weights stored as
    (fan_in, fan_out).  BatchNorm1d: gamma=1, beta=0.  PReLU: a=0.25.
    b1/b2 are kept for reference parity but are dead in the forward pass."""
    ks = jax.random.split(key, 8)

    def linear(kw, kb, fan_in, fan_out):
        bound = 1.0 / jnp.sqrt(fan_in)
        w = jax.random.uniform(kw, (fan_in, fan_out), jnp.float32, -bound, bound)
        b = jax.random.uniform(kb, (1, fan_out), jnp.float32, -bound, bound)
        return w, b

    w1, b1 = linear(ks[0], ks[1], in_dim, out_dim)
    w2, b2 = linear(ks[2], ks[3], out_dim, out_dim)
    w3, b3 = linear(ks[4], ks[5], out_dim, out_dim)
    ws, bs = linear(ks[6], ks[7], in_dim, out_dim)

    ones = jnp.ones((1, out_dim), jnp.float32)
    zeros = jnp.zeros((1, out_dim), jnp.float32)
    prelu = jnp.full((1, 1), 0.25, jnp.float32)

    return {
        "w1": w1, "b1": b1, "g1": ones, "be1": zeros, "a1": prelu,
        "w2": w2, "b2": b2, "g2": ones, "be2": zeros, "a2": prelu,
        "w3": w3, "b3": b3, "a3": prelu,
        "ws": ws, "bs": bs,
    }


def mlp_reference(x, p):
    """Pure-JAX reference mirroring the PyTorch forward (training-mode BN)."""
    def bn(h, g, b):
        m = jnp.mean(h, axis=0, keepdims=True)
        v = jnp.mean((h - m) ** 2, axis=0, keepdims=True)
        return (h - m) / jnp.sqrt(v + EPS) * g + b

    def pr(h, a):
        return jnp.where(h >= 0, h, a[0, 0] * h)

    h = x @ p["w1"] + p["b1"]
    h = pr(bn(h, p["g1"], p["be1"]), p["a1"])
    h = h @ p["w2"] + p["b2"]
    h = pr(bn(h, p["g2"], p["be2"]), p["a2"])
    h = h @ p["w3"] + p["b3"]
    h = pr(h, p["a3"])
    return h + (x @ p["ws"] + p["bs"])


if __name__ == "__main__":
    key = jax.random.PRNGKey(0)
    k_x, k_x2, k_p = jax.random.split(key, 3)

    in_dim, out_dim = 32, 32
    params = init_params(k_p, in_dim, out_dim)

    prep_f32 = prepare_params(params, compute_dtype=jnp.float32)    # strict / v5e path
    prep_bf16 = prepare_params(params, compute_dtype=jnp.bfloat16)  # v6e / v7x fast path

    fwd = jax.jit(functools.partial(mlp_forward, out_dim=out_dim))

    # --- small batch, single row tile ----------------------------------------
    x = jax.random.normal(k_x, (8, in_dim), jnp.float32)
    ref = mlp_reference(x, params)

    out_f32 = jax.block_until_ready(fwd(x, prep_f32))
    assert out_f32.shape == (8, out_dim)
    assert jnp.allclose(out_f32, ref, atol=1e-4, rtol=1e-4), "f32 mismatch"

    out_bf16 = jax.block_until_ready(fwd(x, prep_bf16))
    assert out_bf16.shape == (8, out_dim)
    assert jnp.allclose(out_bf16, ref, atol=1e-1, rtol=1e-1), "bf16 mismatch"

    # --- multi-tile batch with a ragged last tile (exercises BN row masking) --
    x2 = jax.random.normal(k_x2, (40, in_dim), jnp.float32)
    ref2 = mlp_reference(x2, params)
    fwd_tiled = jax.jit(functools.partial(mlp_forward, out_dim=out_dim,
                                          block_rows=16))
    out2 = jax.block_until_ready(fwd_tiled(x2, prep_f32))
    assert out2.shape == (40, out_dim)
    assert jnp.allclose(out2, ref2, atol=1e-4, rtol=1e-4), "tiled f32 mismatch"

    print("KERNEL_OK")
</pallas_src>

<mosaic_0001>
module attributes {stable_mosaic.version = 11 : i64} {
  func.func @_layer3_kernel(%arg0: i32, %arg1: memref<8x128xf32, #tpu.memory_space<vmem>>, %arg2: memref<128x128xf32, #tpu.memory_space<vmem>>, %arg3: memref<1x128xf32, #tpu.memory_space<vmem>>, %arg4: memref<1x128xf32, #tpu.memory_space<vmem>>, %arg5: memref<1x128xf32, #tpu.memory_space<vmem>>, %arg6: memref<8x128xf32, #tpu.memory_space<vmem>>, %arg7: memref<3xf32, #tpu.memory_space<smem>>, %arg8: memref<8x128xf32, #tpu.memory_space<vmem>>) attributes {dimension_semantics = [#tpu.dimension_semantics<parallel>], iteration_bounds = array<i64: 1>, scalar_prefetch = 0 : i64, scratch_operands = 0 : i64, tpu.core_type = #tpu.core_type<tc>, window_params = [{transform_indices = @transform_0, window_bounds = array<i64: 8, 128>}, {pipeline_mode = #tpu.pipeline_mode<synchronous>, transform_indices = @transform_1, window_bounds = array<i64: 128, 128>}, {pipeline_mode = #tpu.pipeline_mode<synchronous>, transform_indices = @transform_2, window_bounds = array<i64: 1, 128>}, {pipeline_mode = #tpu.pipeline_mode<synchronous>, transform_indices = @transform_3, window_bounds = array<i64: 1, 128>}, {pipeline_mode = #tpu.pipeline_mode<synchronous>, transform_indices = @transform_4, window_bounds = array<i64: 1, 128>}, {transform_indices = @transform_5, window_bounds = array<i64: 8, 128>}, {transform_indices = @transform_6, window_bounds = array<i64: 3>}, {transform_indices = @transform_7, window_bounds = array<i64: 8, 128>}]} {
    %c0 = arith.constant 0 : index
    %c0_0 = arith.constant 0 : index
    %0 = vector.load %arg1[%c0, %c0_0] : memref<8x128xf32, #tpu.memory_space<vmem>>, vector<8x128xf32>
    %c0_1 = arith.constant 0 : index
    %c0_2 = arith.constant 0 : index
    %1 = vector.load %arg4[%c0_1, %c0_2] : memref<1x128xf32, #tpu.memory_space<vmem>>, vector<1x128xf32>
    %2 = vector.broadcast %1 : vector<1x128xf32> to vector<8x128xf32>
    %3 = arith.mulf %0, %2 : vector<8x128xf32>
    %c0_3 = arith.constant 0 : index
    %c0_4 = arith.constant 0 : index
    %4 = vector.load %arg5[%c0_3, %c0_4] : memref<1x128xf32, #tpu.memory_space<vmem>>, vector<1x128xf32>
    %5 = vector.broadcast %4 : vector<1x128xf32> to vector<8x128xf32>
    %6 = arith.addf %3, %5 : vector<8x128xf32>
    %c1 = arith.constant 1 : index
    %7 = memref.load %arg7[%c1] : memref<3xf32, #tpu.memory_space<smem>>
    %cst = arith.constant 0.000000e+00 : f32
    %8 = vector.broadcast %cst : f32 to vector<8x128xf32>
    %9 = arith.cmpf oge, %6, %8 : vector<8x128xf32>
    %10 = vector.broadcast %7 : f32 to vector<8x128xf32>
    %11 = arith.mulf %10, %6 : vector<8x128xf32>
    %12 = arith.select %9, %6, %11 : vector<8x128xi1>, vector<8x128xf32>
    %c0_5 = arith.constant 0 : index
    %c0_6 = arith.constant 0 : index
    %13 = vector.load %arg2[%c0_5, %c0_6] : memref<128x128xf32, #tpu.memory_space<vmem>>, vector<128x128xf32>
    %cst_7 = arith.constant dense<0.000000e+00> : vector<8x128xf32>
    %14 = tpu.matmul %12, %13, %cst_7 {dimension_numbers = #tpu.dot_dimension_numbers<[1], [0], [0], [1], [0, 0, 1, 1], [], []>} : vector<8x128xf32>, vector<128x128xf32>, vector<8x128xf32> -> vector<8x128xf32>
    %c0_8 = arith.constant 0 : index
    %c0_9 = arith.constant 0 : index
    %15 = vector.load %arg3[%c0_8, %c0_9] : memref<1x128xf32, #tpu.memory_space<vmem>>, vector<1x128xf32>
    %16 = vector.broadcast %15 : vector<1x128xf32> to vector<8x128xf32>
    %17 = arith.addf %14, %16 : vector<8x128xf32>
    %c2 = arith.constant 2 : index
    %18 = memref.load %arg7[%c2] : memref<3xf32, #tpu.memory_space<smem>>
    %cst_10 = arith.constant 0.000000e+00 : f32
    %19 = vector.broadcast %cst_10 : f32 to vector<8x128xf32>
    %20 = arith.cmpf oge, %17, %19 : vector<8x128xf32>
    %21 = vector.broadcast %18 : f32 to vector<8x128xf32>
    %22 = arith.mulf %21, %17 : vector<8x128xf32>
    %23 = arith.select %20, %17, %22 : vector<8x128xi1>, vector<8x128xf32>
    %c0_11 = arith.constant 0 : index
    %c0_12 = arith.constant 0 : index
    %24 = vector.load %arg6[%c0_11, %c0_12] : memref<8x128xf32, #tpu.memory_space<vmem>>, vector<8x128xf32>
    %25 = arith.addf %23, %24 : vector<8x128xf32>
    %c0_13 = arith.constant 0 : index
    %c0_14 = arith.constant 0 : index
    %26 = vector.load %arg8[%c0_13, %c0_14] : memref<8x128xf32, #tpu.memory_space<vmem>>, vector<8x128xf32>
    tpu.vector_store %arg8[%c0_13, %c0_14], %25 {strides = array<i32>} : memref<8x128xf32, #tpu.memory_space<vmem>>, vector<8x128xf32>,
    return
  }
  func.func @transform_0(%arg0: i32) -> (i32, i32) {
    %c0_i32 = arith.constant 0 : i32
    %c0_i32_0 = arith.constant 0 : i32
    return %arg0, %c0_i32 : i32, i32
  }
  func.func @transform_1(%arg0: i32) -> (i32, i32) {
    %c0_i32 = arith.constant 0 : i32
    %c0_i32_0 = arith.constant 0 : i32
    %c0_i32_1 = arith.constant 0 : i32
    return %c0_i32, %c0_i32_0 : i32, i32
  }
  func.func @transform_2(%arg0: i32) -> (i32, i32) {
    %c0_i32 = arith.constant 0 : i32
    %c0_i32_0 = arith.constant 0 : i32
    %c0_i32_1 = arith.constant 0 : i32
    return %c0_i32, %c0_i32_0 : i32, i32
  }
  func.func @transform_3(%arg0: i32) -> (i32, i32) {
    %c0_i32 = arith.constant 0 : i32
    %c0_i32_0 = arith.constant 0 : i32
    %c0_i32_1 = arith.constant 0 : i32
    return %c0_i32, %c0_i32_0 : i32, i32
  }
  func.func @transform_4(%arg0: i32) -> (i32, i32) {
    %c0_i32 = arith.constant 0 : i32
    %c0_i32_0 = arith.constant 0 : i32
    %c0_i32_1 = arith.constant 0 : i32
    return %c0_i32, %c0_i32_0 : i32, i32
  }
  func.func @transform_5(%arg0: i32) -> (i32, i32) {
    %c0_i32 = arith.constant 0 : i32
    %c0_i32_0 = arith.constant 0 : i32
    return %arg0, %c0_i32 : i32, i32
  }
  func.func @transform_6(%arg0: i32) -> i32 {
    %c0_i32 = arith.constant 0 : i32
    %c0_i32_0 = arith.constant 0 : i32
    return %c0_i32 : i32
  }
  func.func @transform_7(%arg0: i32) -> (i32, i32) {
    %c0_i32 = arith.constant 0 : i32
    %c0_i32_0 = arith.constant 0 : i32
    return %arg0, %c0_i32 : i32, i32
  }
}

module attributes {stable_mosaic.version = 11 : i64} {
  func.func @_layer2_kernel(%arg0: i32, %arg1: memref<8x128xf32, #tpu.memory_space<vmem>>, %arg2: memref<128x128xf32, #tpu.memory_space<vmem>>, %arg3: memref<1x128xf32, #tpu.memory_space<vmem>>, %arg4: memref<1x128xf32, #tpu.memory_space<vmem>>, %arg5: memref<3xf32, #tpu.memory_space<smem>>, %arg6: memref<8x128xf32, #tpu.memory_space<vmem>>, %arg7: memref<1x2x128xf32, #tpu.memory_space<vmem>>) attributes {dimension_semantics = [#tpu.dimension_semantics<parallel>], iteration_bounds = array<i64: 1>, scalar_prefetch = 0 : i64, scratch_operands = 0 : i64, tpu.core_type = #tpu.core_type<tc>, window_params = [{transform_indices = @transform_0, window_bounds = array<i64: 8, 128>}, {pipeline_mode = #tpu.pipeline_mode<synchronous>, transform_indices = @transform_1, window_bounds = array<i64: 128, 128>}, {pipeline_mode = #tpu.pipeline_mode<synchronous>, transform_indices = @transform_2, window_bounds = array<i64: 1, 128>}, {pipeline_mode = #tpu.pipeline_mode<synchronous>, transform_indices = @transform_3, window_bounds = array<i64: 1, 128>}, {transform_indices = @transform_4, window_bounds = array<i64: 3>}, {transform_indices = @transform_5, window_bounds = array<i64: 8, 128>}, {transform_indices = @transform_6, window_bounds = array<i64: 1, 2, 128>}]} {
    %c0 = arith.constant 0 : index
    %c0_0 = arith.constant 0 : index
    %0 = vector.load %arg1[%c0, %c0_0] : memref<8x128xf32, #tpu.memory_space<vmem>>, vector<8x128xf32>
    %c0_1 = arith.constant 0 : index
    %c0_2 = arith.constant 0 : index
    %1 = vector.load %arg3[%c0_1, %c0_2] : memref<1x128xf32, #tpu.memory_space<vmem>>, vector<1x128xf32>
    %2 = vector.broadcast %1 : vector<1x128xf32> to vector<8x128xf32>
    %3 = arith.mulf %0, %2 : vector<8x128xf32>
    %c0_3 = arith.constant 0 : index
    %c0_4 = arith.constant 0 : index
    %4 = vector.load %arg4[%c0_3, %c0_4] : memref<1x128xf32, #tpu.memory_space<vmem>>, vector<1x128xf32>
    %5 = vector.broadcast %4 : vector<1x128xf32> to vector<8x128xf32>
    %6 = arith.addf %3, %5 : vector<8x128xf32>
    %c0_5 = arith.constant 0 : index
    %7 = memref.load %arg5[%c0_5] : memref<3xf32, #tpu.memory_space<smem>>
    %cst = arith.constant 0.000000e+00 : f32
    %8 = vector.broadcast %cst : f32 to vector<8x128xf32>
    %9 = arith.cmpf oge, %6, %8 : vector<8x128xf32>
    %10 = vector.broadcast %7 : f32 to vector<8x128xf32>
    %11 = arith.mulf %10, %6 : vector<8x128xf32>
    %12 = arith.select %9, %6, %11 : vector<8x128xi1>, vector<8x128xf32>
    %c0_6 = arith.constant 0 : index
    %c0_7 = arith.constant 0 : index
    %13 = vector.load %arg2[%c0_6, %c0_7] : memref<128x128xf32, #tpu.memory_space<vmem>>, vector<128x128xf32>
    %cst_8 = arith.constant dense<0.000000e+00> : vector<8x128xf32>
    %14 = tpu.matmul %12, %13, %cst_8 {dimension_numbers = #tpu.dot_dimension_numbers<[1], [0], [0], [1], [0, 0, 1, 1], [], []>} : vector<8x128xf32>, vector<128x128xf32>, vector<8x128xf32> -> vector<8x128xf32>
    %cst_9 = arith.constant dense<0.000000e+00> : vector<128xf32>
    %15 = vector.multi_reduction <add>, %14, %cst_9 [0] : vector<8x128xf32> to vector<128xf32>
    %16 = vector.shape_cast %15 : vector<128xf32> to vector<1x128xf32>
    %17 = arith.mulf %14, %14 : vector<8x128xf32>
    %cst_10 = arith.constant dense<0.000000e+00> : vector<128xf32>
    %18 = vector.multi_reduction <add>, %17, %cst_10 [0] : vector<8x128xf32> to vector<128xf32>
    %19 = vector.shape_cast %18 : vector<128xf32> to vector<1x128xf32>
    %20 = tpu.concatenate %16, %19 in 0 : vector<1x128xf32>, vector<1x128xf32> -> vector<2x128xf32>
    %21 = vector.shape_cast %20 : vector<2x128xf32> to vector<1x2x128xf32>
    %c0_11 = arith.constant 0 : index
    %c0_12 = arith.constant 0 : index
    %c0_13 = arith.constant 0 : index
    %22 = vector.load %arg7[%c0_11, %c0_12, %c0_13] : memref<1x2x128xf32, #tpu.memory_space<vmem>>, vector<1x2x128xf32>
    tpu.vector_store %arg7[%c0_11, %c0_12, %c0_13], %21 {strides = array<i32>} : memref<1x2x128xf32, #tpu.memory_space<vmem>>, vector<1x2x128xf32>,
    %c0_14 = arith.constant 0 : index
    %c0_15 = arith.constant 0 : index
    %23 = vector.load %arg6[%c0_14, %c0_15] : memref<8x128xf32, #tpu.memory_space<vmem>>, vector<8x128xf32>
    tpu.vector_store %arg6[%c0_14, %c0_15], %14 {strides = array<i32>} : memref<8x128xf32, #tpu.memory_space<vmem>>, vector<8x128xf32>,
    return
  }
  func.func @transform_0(%arg0: i32) -> (i32, i32) {
    %c0_i32 = arith.constant 0 : i32
    %c0_i32_0 = arith.constant 0 : i32
    return %arg0, %c0_i32 : i32, i32
  }
  func.func @transform_1(%arg0: i32) -> (i32, i32) {
    %c0_i32 = arith.constant 0 : i32
    %c0_i32_0 = arith.constant 0 : i32
    %c0_i32_1 = arith.constant 0 : i32
    return %c0_i32, %c0_i32_0 : i32, i32
  }
  func.func @transform_2(%arg0: i32) -> (i32, i32) {
    %c0_i32 = arith.constant 0 : i32
    %c0_i32_0 = arith.constant 0 : i32
    %c0_i32_1 = arith.constant 0 : i32
    return %c0_i32, %c0_i32_0 : i32, i32
  }
  func.func @transform_3(%arg0: i32) -> (i32, i32) {
    %c0_i32 = arith.constant 0 : i32
    %c0_i32_0 = arith.constant 0 : i32
    %c0_i32_1 = arith.constant 0 : i32
    return %c0_i32, %c0_i32_0 : i32, i32
  }
  func.func @transform_4(%arg0: i32) -> i32 {
    %c0_i32 = arith.constant 0 : i32
    %c0_i32_0 = arith.constant 0 : i32
    return %c0_i32 : i32
  }
  func.func @transform_5(%arg0: i32) -> (i32, i32) {
    %c0_i32 = arith.constant 0 : i32
    %c0_i32_0 = arith.constant 0 : i32
    return %arg0, %c0_i32 : i32, i32
  }
  func.func @transform_6(%arg0: i32) -> (i32, i32, i32) {
    %c0_i32 = arith.constant 0 : i32
    %c0_i32_0 = arith.constant 0 : i32
    %c0_i32_1 = arith.constant 0 : i32
    return %arg0, %c0_i32, %c0_i32_0 : i32, i32, i32
  }
}

module attributes {stable_mosaic.version = 11 : i64} {
  func.func @_layer1_kernel(%arg0: i32, %arg1: memref<8x32xf32, #tpu.memory_space<vmem>>, %arg2: memref<32x256xf32, #tpu.memory_space<vmem>>, %arg3: memref<1x128xf32, #tpu.memory_space<vmem>>, %arg4: memref<8x128xf32, #tpu.memory_space<vmem>>, %arg5: memref<8x128xf32, #tpu.memory_space<vmem>>, %arg6: memref<1x2x128xf32, #tpu.memory_space<vmem>>) attributes {dimension_semantics = [#tpu.dimension_semantics<parallel>], iteration_bounds = array<i64: 1>, scalar_prefetch = 0 : i64, scratch_operands = 0 : i64, tpu.core_type = #tpu.core_type<tc>, window_params = [{transform_indices = @transform_0, window_bounds = array<i64: 8, 32>}, {pipeline_mode = #tpu.pipeline_mode<synchronous>, transform_indices = @transform_1, window_bounds = array<i64: 32, 256>}, {pipeline_mode = #tpu.pipeline_mode<synchronous>, transform_indices = @transform_2, window_bounds = array<i64: 1, 128>}, {transform_indices = @transform_3, window_bounds = array<i64: 8, 128>}, {transform_indices = @transform_4, window_bounds = array<i64: 8, 128>}, {transform_indices = @transform_5, window_bounds = array<i64: 1, 2, 128>}]} {
    %c0 = arith.constant 0 : index
    %c0_0 = arith.constant 0 : index
    %0 = vector.load %arg1[%c0, %c0_0] : memref<8x32xf32, #tpu.memory_space<vmem>>, vector<8x32xf32>
    %c0_1 = arith.constant 0 : index
    %c0_2 = arith.constant 0 : index
    %1 = vector.load %arg2[%c0_1, %c0_2] : memref<32x256xf32, #tpu.memory_space<vmem>>, vector<32x256xf32>
    %cst = arith.constant dense<0.000000e+00> : vector<8x256xf32>
    %2 = tpu.matmul %0, %1, %cst {dimension_numbers = #tpu.dot_dimension_numbers<[1], [0], [0], [1], [0, 0, 1, 1], [], []>} : vector<8x32xf32>, vector<32x256xf32>, vector<8x256xf32> -> vector<8x256xf32>
    %3 = vector.extract_strided_slice %2 {offsets = [0, 0], sizes = [8, 128], strides = [1, 1]} : vector<8x256xf32> to vector<8x128xf32>
    %4 = vector.extract_strided_slice %2 {offsets = [0, 128], sizes = [8, 128], strides = [1, 1]} : vector<8x256xf32> to vector<8x128xf32>
    %c0_3 = arith.constant 0 : index
    %c0_4 = arith.constant 0 : index
    %5 = vector.load %arg3[%c0_3, %c0_4] : memref<1x128xf32, #tpu.memory_space<vmem>>, vector<1x128xf32>
    %6 = vector.broadcast %5 : vector<1x128xf32> to vector<8x128xf32>
    %7 = arith.addf %4, %6 : vector<8x128xf32>
    %c0_5 = arith.constant 0 : index
    %c0_6 = arith.constant 0 : index
    %8 = vector.load %arg5[%c0_5, %c0_6] : memref<8x128xf32, #tpu.memory_space<vmem>>, vector<8x128xf32>
    tpu.vector_store %arg5[%c0_5, %c0_6], %7 {strides = array<i32>} : memref<8x128xf32, #tpu.memory_space<vmem>>, vector<8x128xf32>,
    %cst_7 = arith.constant dense<0.000000e+00> : vector<128xf32>
    %9 = vector.multi_reduction <add>, %3, %cst_7 [0] : vector<8x128xf32> to vector<128xf32>
    %10 = vector.shape_cast %9 : vector<128xf32> to vector<1x128xf32>
    %11 = arith.mulf %3, %3 : vector<8x128xf32>
    %cst_8 = arith.constant dense<0.000000e+00> : vector<128xf32>
    %12 = vector.multi_reduction <add>, %11, %cst_8 [0] : vector<8x128xf32> to vector<128xf32>
    %13 = vector.shape_cast %12 : vector<128xf32> to vector<1x128xf32>
    %14 = tpu.concatenate %10, %13 in 0 : vector<1x128xf32>, vector<1x128xf32> -> vector<2x128xf32>
    %15 = vector.shape_cast %14 : vector<2x128xf32> to vector<1x2x128xf32>
    %c0_9 = arith.constant 0 : index
    %c0_10 = arith.constant 0 : index
    %c0_11 = arith.constant 0 : index
    %16 = vector.load %arg6[%c0_9, %c0_10, %c0_11] : memref<1x2x128xf32, #tpu.memory_space<vmem>>, vector<1x2x128xf32>
    tpu.vector_store %arg6[%c0_9, %c0_10, %c0_11], %15 {strides = array<i32>} : memref<1x2x128xf32, #tpu.memory_space<vmem>>, vector<1x2x128xf32>,
    %c0_12 = arith.constant 0 : index
    %c0_13 = arith.constant 0 : index
    %17 = vector.load %arg4[%c0_12, %c0_13] : memref<8x128xf32, #tpu.memory_space<vmem>>, vector<8x128xf32>
    tpu.vector_store %arg4[%c0_12, %c0_13], %3 {strides = array<i32>} : memref<8x128xf32, #tpu.memory_space<vmem>>, vector<8x128xf32>,
    return
  }
  func.func @transform_0(%arg0: i32) -> (i32, i32) {
    %c0_i32 = arith.constant 0 : i32
    %c0_i32_0 = arith.constant 0 : i32
    return %arg0, %c0_i32 : i32, i32
  }
  func.func @transform_1(%arg0: i32) -> (i32, i32) {
    %c0_i32 = arith.constant 0 : i32
    %c0_i32_0 = arith.constant 0 : i32
    %c0_i32_1 = arith.constant 0 : i32
    return %c0_i32, %c0_i32_0 : i32, i32
  }
  func.func @transform_2(%arg0: i32) -> (i32, i32) {
    %c0_i32 = arith.constant 0 : i32
    %c0_i32_0 = arith.constant 0 : i32
    %c0_i32_1 = arith.constant 0 : i32
    return %c0_i32, %c0_i32_0 : i32, i32
  }
  func.func @transform_3(%arg0: i32) -> (i32, i32) {
    %c0_i32 = arith.constant 0 : i32
    %c0_i32_0 = arith.constant 0 : i32
    return %arg0, %c0_i32 : i32, i32
  }
  func.func @transform_4(%arg0: i32) -> (i32, i32) {
    %c0_i32 = arith.constant 0 : i32
    %c0_i32_0 = arith.constant 0 : i32
    return %arg0, %c0_i32 : i32, i32
  }
  func.func @transform_5(%arg0: i32) -> (i32, i32, i32) {
    %c0_i32 = arith.constant 0 : i32
    %c0_i32_0 = arith.constant 0 : i32
    %c0_i32_1 = arith.constant 0 : i32
    return %arg0, %c0_i32, %c0_i32_0 : i32, i32, i32
  }
}

</mosaic_0001>

<llo_original>
// kernel: mlp_forward.5
$region0: #{mlp_forward.5}
  #allocation0 [shape = 'u32[]', space=smem, size = 0x4, offset = 0x4, fixed_abs, tag = 'smem constant byte address 0x4 - core index']
  #allocation1 [shape = 'u32[144,128]{1,0:T(1,128)}', space=vmem, size = 0x12000, scoped, tag = 'internal scratch']
  %s0 = inlined_call_operand.vmem [shape: f32[8,128], index: 0, kind: input, shape index: {}]
  %s1 = inlined_call_operand.vmem [shape: f32[128,128], index: 1, kind: input, shape index: {}]
  %s2 = inlined_call_operand.vmem [shape: f32[1,128], index: 2, kind: input, shape index: {}]
  %s3 = inlined_call_operand.vmem [shape: f32[1,128], index: 3, kind: input, shape index: {}]
  %s4 = inlined_call_operand.vmem [shape: f32[1,128], index: 4, kind: input, shape index: {}]
  %s5 = inlined_call_operand.vmem [shape: f32[8,128], index: 5, kind: input, shape index: {}]
  %s6 = inlined_call_operand.vmem [shape: f32[3], index: 6, kind: input, shape index: {}]
  %s7 = inlined_call_operand.hbm [shape: f32[8,128], index: 7, kind: output, shape index: {}]
  %s8 = sld [smem:[#allocation0]]
  $region42: #{mlp_forward.5} parent=0
    _
  %s10 = ssub.s32 1, %s8
  %s11 = scalar_select 0, %s10, %s8
  $region1: #{mlp_forward.5} parent=0
    #allocation2 [shape = 'u8[512]{0}', space=smem, size = 0x200, scoped, tag = 'input window, operand 6, single buffered']
    #allocation3 [shape = 's32[1]{0}', space=sflag, size = 0x4, scoped, tag = 'scoped memory for mlp_forward.5']
    #allocation4 [shape = 's32[1]{0}', space=sflag, size = 0x4, scoped, tag = 'scoped memory for mlp_forward.5']
    #allocation5 [shape = 'u8[4096]{0}', space=vmem, size = 0x1000, scoped, tag = 'output window, operand 0, single buffered']
    %12 = vsyncpa [#allocation4], 0
    %13 = vsyncpa [#allocation3], 0
    // Predicated region
    $region2: #{mlp_forward.5} parent=1 // pred_check
      _
    $region3: #{mlp_forward.5} parent=1 // pred_check_branch
      %15 = sbr.rel (0) target = $region5
    $region4: #{mlp_forward.5} parent=1 // pred_region
      _
    $region5: #{mlp_forward.5} parent=1 // pred_fallthru
      _
    // Predicated region
    $region6: #{mlp_forward.5} parent=1 // pred_check
      _
    $region7: #{mlp_forward.5} parent=1 // pred_check_branch
      %17 = sbr.rel (0) target = $region9
    $region8: #{mlp_forward.5} parent=1 // pred_region
      _
    $region9: #{mlp_forward.5} parent=1 // pred_fallthru
      _
    // Predicated region
    $region10: #{mlp_forward.5} parent=1 // pred_check
      _
    $region11: #{mlp_forward.5} parent=1 // pred_check_branch
      %19 = sbr.rel (0) target = $region13
    $region12: #{mlp_forward.5} parent=1 // pred_region
      _
    $region13: #{mlp_forward.5} parent=1 // pred_fallthru
      _
    // Predicated region
    $region14: #{mlp_forward.5} parent=1 // pred_check
      _
    $region15: #{mlp_forward.5} parent=1 // pred_check_branch
      %21 = sbr.rel (0) target = $region17
    $region16: #{mlp_forward.5} parent=1 // pred_region
      _
    $region17: #{mlp_forward.5} parent=1 // pred_fallthru
      _
    // Predicated region
    $region18: #{mlp_forward.5} parent=1 // pred_check
      _
    $region19: #{mlp_forward.5} parent=1 // pred_check_branch
      %23 = sbr.rel (0) target = $region21
    $region20: #{mlp_forward.5} parent=1 // pred_region
      _
    $region21: #{mlp_forward.5} parent=1 // pred_fallthru
      _
    // Predicated region
    $region22: #{mlp_forward.5} parent=1 // pred_check
      _
    $region23: #{mlp_forward.5} parent=1 // pred_check_branch
      %25 = sbr.rel (0) target = $region25
    $region24: #{mlp_forward.5} parent=1 // pred_region
      _
    $region25: #{mlp_forward.5} parent=1 // pred_fallthru
      _
    // Predicated region
    $region26: #{mlp_forward.5} parent=1 // pred_check
      _
    $region27: #{mlp_forward.5} parent=1 // pred_check_branch
      %27 = sbr.rel (0) target = $region29
    $region28: #{mlp_forward.5} parent=1 // pred_region
      %s29 = ssub.s32 16, 16
      %30 = vsyncadd [#allocation4], %s29
      %s32 = sshll.u32 %s6, 4
      %s33 = int_to_ptr.vmem [resolvable:$true] %s32
      %35 = dma.vmem_to_smem %s33, 16, [#allocation2], [#allocation4]
    $region29: #{mlp_forward.5} parent=1 // pred_fallthru
      _
    // Predicated region
    $region30: #{mlp_forward.5} parent=1 // pred_check
      _
    $region31: #{mlp_forward.5} parent=1 // pred_check_branch
      %37 = sbr.rel (0) target = $region33
    $region32: #{mlp_forward.5} parent=1 // pred_region
      %38 = dma.done [#allocation4], 16
    $region33: #{mlp_forward.5} parent=1 // pred_fallthru
      _
    %39 = sfence
    %v40 = vld [vmem:[%s0] sm:$0xff]
    %v41 = vld [vmem:[%s3] sm:$0x1]
    %v43 = vlaneseq
    %v44 = vshrl.u32 %v43, 7
    %v45 = vsub.s32 0, %v44
    %v46 = vrot.slane %v41, %v45
    %v48 = vmul.f32 %v40, %v46
    %v49 = vld [vmem:[%s4] sm:$0x1]
    %v51 = vlaneseq
    %v52 = vshrl.u32 %v51, 7
    %v53 = vsub.s32 0, %v52
    %v54 = vrot.slane %v49, %v53
    %v56 = vadd.f32 %v48, %v54
    %s57 = sld [smem:[#allocation2 + $0x1]]
    %vm58 = vcmp.ge.f32.partialorder %v56, 0.0
    %v59 = vstv %s57
    %v60 = vmul.f32 %v59, %v56
    %v61 = vsel %vm58, %v56, %v60
    %v62 = vld [vmem:[%s1] sm:$0xff]
    %v63 = vld [vmem:[%s1 + $0x8] sm:$0xff]
    %v64 = vld [vmem:[%s1 + $0x10] sm:$0xff]
    %v65 = vld [vmem:[%s1 + $0x18] sm:$0xff]
    %v66 = vld [vmem:[%s1 + $0x20] sm:$0xff]
    %v67 = vld [vmem:[%s1 + $0x28] sm:$0xff]
    %v68 = vld [vmem:[%s1 + $0x30] sm:$0xff]
    %v69 = vld [vmem:[%s1 + $0x38] sm:$0xff]
    %v70 = vld [vmem:[%s1 + $0x40] sm:$0xff]
    %v71 = vld [vmem:[%s1 + $0x48] sm:$0xff]
    %v72 = vld [vmem:[%s1 + $0x50] sm:$0xff]
    %v73 = vld [vmem:[%s1 + $0x58] sm:$0xff]
    %v74 = vld [vmem:[%s1 + $0x60] sm:$0xff]
    %v75 = vld [vmem:[%s1 + $0x68] sm:$0xff]
    %v76 = vld [vmem:[%s1 + $0x70] sm:$0xff]
    %v77 = vld [vmem:[%s1 + $0x78] sm:$0xff]
    %v78 = vld [vmem:[%s2] sm:$0x1]
    %v80 = vlaneseq
    %v81 = vshrl.u32 %v80, 7
    %v82 = vsub.s32 0, %v81
    %v83 = vrot.slane %v78, %v82
    %85 = vmatprep.subr.mxu0 0.0
    %86 = vmatpush1.msra.mxu0 %v77
    %87 = vmatprep.subr.mxu0 0.0
    %88 = vmatpush1.msra.mxu0 %v76
    %89 = vmatprep.subr.mxu0 0.0
    %90 = vmatpush1.msra.mxu0 %v75
    %91 = vmatprep.subr.mxu0 0.0
    %92 = vmatpush1.msra.mxu0 %v74
    %93 = vmatprep.subr.mxu0 0.0
    %94 = vmatpush1.msra.mxu0 %v73
    %95 = vmatprep.subr.mxu0 0.0
    %96 = vmatpush1.msra.mxu0 %v72
    %97 = vmatprep.subr.mxu0 0.0
    %98 = vmatpush1.msra.mxu0 %v71
    %99 = vmatprep.subr.mxu0 0.0
    %100 = vmatpush1.msra.mxu0 %v70
    %101 = vmatprep.subr.mxu0 0.0
    %102 = vmatpush1.msra.mxu0 %v69
    %103 = vmatprep.subr.mxu0 0.0
    %104 = vmatpush1.msra.mxu0 %v68
    %105 = vmatprep.subr.mxu0 0.0
    %106 = vmatpush1.msra.mxu0 %v67
    %107 = vmatprep.subr.mxu0 0.0
    %108 = vmatpush1.msra.mxu0 %v66
    %109 = vmatprep.subr.mxu0 0.0
    %110 = vmatpush1.msra.mxu0 %v65
    %111 = vmatprep.subr.mxu0 0.0
    %112 = vmatpush1.msra.mxu0 %v64
    %113 = vmatprep.subr.mxu0 0.0
    %114 = vmatpush1.msra.mxu0 %v63
    %115 = vmatprep.subr.mxu0 0.0
    %116 = vmatpush1.msra.mxu0 %v62
    %117 = vmatprep.subr.mxu0 0.0
    %118 = vmatpush2.msra.mxu0 0.0
    %119 = vmatprep.subr.mxu0 0.0
    %120 = vmatpush2.msra.mxu0 0.0
    %121 = vmatprep.subr.mxu0 0.0
    %122 = vmatpush2.msra.mxu0 0.0
    %123 = vmatprep.subr.mxu0 0.0
    %124 = vmatpush2.msra.mxu0 0.0
    %125 = vmatprep.subr.mxu0 0.0
    %126 = vmatpush2.msra.mxu0 0.0
    %127 = vmatprep.subr.mxu0 0.0
    %128 = vmatpush2.msra.mxu0 0.0
    %129 = vmatprep.subr.mxu0 0.0
    %130 = vmatpush2.msra.mxu0 0.0
    %131 = vmatprep.subr.mxu0 0.0
    %132 = vmatpush2.msra.mxu0 0.0
    %133 = vmatprep.subr.mxu0 0.0
    %134 = vmatpush2.msra.mxu0 0.0
    %135 = vmatprep.subr.mxu0 0.0
    %136 = vmatpush2.msra.mxu0 0.0
    %137 = vmatprep.subr.mxu0 0.0
    %138 = vmatpush2.msra.mxu0 0.0
    %139 = vmatprep.subr.mxu0 0.0
    %140 = vmatpush2.msra.mxu0 0.0
    %141 = vmatprep.subr.mxu0 0.0
    %142 = vmatpush2.msra.mxu0 0.0
    %143 = vmatprep.subr.mxu0 0.0
    %144 = vmatpush2.msra.mxu0 0.0
    %145 = vmatprep.subr.mxu0 0.0
    %146 = vmatpush2.msra.mxu0 0.0
    %147 = vmatprep.subr.mxu0 0.0
    %148 = vmatpush2.msra.mxu0 0.0
    %149 = vmatprep.mubr.f32.mxu0 0.0
    %150 = vmatmul.mubr.f32.gmra.mxu0 %v61
    %v151 = vpop.f32.mrf.mxu0
    %v152 = vadd.f32 %v83, %v151
    %v153 = vpop.f32.mrf.mxu0
    %154 = vdwg.mxu0
    %s155 = sld [smem:[#allocation2 + $0x2]]
    %vm156 = vcmp.ge.f32.partialorder %v152, 0.0
    %v157 = vstv %s155
    %v158 = vmul.f32 %v157, %v152
    %v159 = vsel %vm156, %v152, %v158
    %v160 = vld [vmem:[%s5] sm:$0xff]
    %v161 = vadd.f32 %v159, %v160
    %162 = vst [vmem:[#allocation5] sm:$0xff] %v161
    // Predicated region
    $region34: #{mlp_forward.5} parent=1 // pred_check
      _
    $region35: #{mlp_forward.5} parent=1 // pred_check_branch
      %164 = sbr.rel (0) target = $region37
    $region36: #{mlp_forward.5} parent=1 // pred_region
      %s166 = ssub.s32 128, 128
      %167 = vsyncadd [#allocation3], %s166
      %s169 = sshll.u32 [#allocation5], 4
      %s170 = int_to_ptr.vmem [resolvable:$true] %s169
      %172 = dma.vmem_to_hbm [thread:$0]  %s170, 128, %s7, [#allocation3]
    $region37: #{mlp_forward.5} parent=1 // pred_fallthru
      _
    // Predicated region
    $region38: #{mlp_forward.5} parent=1 // pred_check
      _
    $region39: #{mlp_forward.5} parent=1 // pred_check_branch
      %174 = sbr.rel (0) target = $region41
    $region40: #{mlp_forward.5} parent=1 // pred_region
      %175 = dma.done [#allocation3], 128
    $region41: #{mlp_forward.5} parent=1 // pred_fallthru
      _
    %176 = vsyncpa [#allocation3], 1
    %177 = vsyncpa [#allocation4], 1

// kernel: mlp_forward.4
$region0: #{mlp_forward.4}
  #allocation0 [shape = 'u32[]', space=smem, size = 0x4, offset = 0x4, fixed_abs, tag = 'smem constant byte address 0x4 - core index']
  #allocation1 [shape = 'u32[144,128]{1,0:T(1,128)}', space=vmem, size = 0x12000, scoped, tag = 'internal scratch']
  %s0 = inlined_call_operand.vmem [shape: f32[8,128], index: 0, kind: input, shape index: {}]
  %s1 = inlined_call_operand.hbm [shape: f32[128,128], index: 1, kind: input, shape index: {}]
  %s2 = inlined_call_operand.vmem [shape: f32[1,128], index: 2, kind: input, shape index: {}]
  %s3 = inlined_call_operand.vmem [shape: f32[1,128], index: 3, kind: input, shape index: {}]
  %s4 = inlined_call_operand.vmem [shape: f32[3], index: 4, kind: input, shape index: {}]
  %s5 = inlined_call_operand.vmem [shape: f32[8,128], index: 5, kind: output, shape index: {0}]
  %s6 = inlined_call_operand.vmem [shape: f32[1,2,128], index: 6, kind: output, shape index: {1}]
  %7 = xla_tuple %s5, %s6
  %s8 = sld [smem:[#allocation0]]
  $region46: #{mlp_forward.4} parent=0
    _
  %s10 = ssub.s32 1, %s8
  %s11 = scalar_select 0, %s10, %s8
  $region1: #{mlp_forward.4} parent=0
    #allocation2 [shape = 'u8[65536]{0}', space=vmem, size = 0x10000, scoped, tag = 'input window, operand 1, single buffered']
    #allocation3 [shape = 's32[1]{0}', space=sflag, size = 0x4, scoped, tag = 'scoped memory for mlp_forward.4']
    #allocation4 [shape = 's32[1]{0}', space=sflag, size = 0x4, scoped, tag = 'scoped memory for mlp_forward.4']
    #allocation5 [shape = 'u8[512]{0}', space=smem, size = 0x200, scoped, tag = 'input window, operand 4, single buffered']
    %12 = vsyncpa [#allocation3], 0
    %13 = vsyncpa [#allocation4], 0
    // Predicated region
    $region2: #{mlp_forward.4} parent=1 // pred_check
      _
    $region3: #{mlp_forward.4} parent=1 // pred_check_branch
      %15 = sbr.rel (0) target = $region5
    $region4: #{mlp_forward.4} parent=1 // pred_region
      _
    $region5: #{mlp_forward.4} parent=1 // pred_fallthru
      _
    // Predicated region
    $region6: #{mlp_forward.4} parent=1 // pred_check
      _
    $region7: #{mlp_forward.4} parent=1 // pred_check_branch
      %17 = sbr.rel (0) target = $region9
    $region8: #{mlp_forward.4} parent=1 // pred_region
      %s19 = ssub.s32 2048, 2048
      %20 = vsyncadd [#allocation3], %s19
      %s21 = sshll.u32 [#allocation2], 4
      %s22 = int_to_ptr.vmem [resolvable:$true] %s21
      %27 = dma.hbm_to_vmem [thread:$0]  %s1, 2048, %s22, [#allocation3], 128, 128, 8
    $region9: #{mlp_forward.4} parent=1 // pred_fallthru
      _
    // Predicated region
    $region10: #{mlp_forward.4} parent=1 // pred_check
      _
    $region11: #{mlp_forward.4} parent=1 // pred_check_branch
      %29 = sbr.rel (0) target = $region13
    $region12: #{mlp_forward.4} parent=1 // pred_region
      _
    $region13: #{mlp_forward.4} parent=1 // pred_fallthru
      _
    // Predicated region
    $region14: #{mlp_forward.4} parent=1 // pred_check
      _
    $region15: #{mlp_forward.4} parent=1 // pred_check_branch
      %31 = sbr.rel (0) target = $region17
    $region16: #{mlp_forward.4} parent=1 // pred_region
      _
    $region17: #{mlp_forward.4} parent=1 // pred_fallthru
      _
    // Predicated region
    $region18: #{mlp_forward.4} parent=1 // pred_check
      _
    $region19: #{mlp_forward.4} parent=1 // pred_check_branch
      %33 = sbr.rel (0) target = $region21
    $region20: #{mlp_forward.4} parent=1 // pred_region
      %s35 = ssub.s32 16, 16
      %36 = vsyncadd [#allocation4], %s35
      %s38 = sshll.u32 %s4, 4
      %s39 = int_to_ptr.vmem [resolvable:$true] %s38
      %41 = dma.vmem_to_smem %s39, 16, [#allocation5], [#allocation4]
    $region21: #{mlp_forward.4} parent=1 // pred_fallthru
      _
    // Predicated region
    $region22: #{mlp_forward.4} parent=1 // pred_check
      _
    $region23: #{mlp_forward.4} parent=1 // pred_check_branch
      %43 = sbr.rel (0) target = $region25
    $region24: #{mlp_forward.4} parent=1 // pred_region
      %44 = dma.done [#allocation3], 2048
    $region25: #{mlp_forward.4} parent=1 // pred_fallthru
      _
    // Predicated region
    $region26: #{mlp_forward.4} parent=1 // pred_check
      _
    $region27: #{mlp_forward.4} parent=1 // pred_check_branch
      %46 = sbr.rel (0) target = $region29
    $region28: #{mlp_forward.4} parent=1 // pred_region
      %47 = dma.done [#allocation4], 16
    $region29: #{mlp_forward.4} parent=1 // pred_fallthru
      _
    %48 = sfence
    %v49 = vld [vmem:[%s0] sm:$0xff]
    %v50 = vld [vmem:[%s2] sm:$0x1]
    %v52 = vlaneseq
    %v53 = vshrl.u32 %v52, 7
    %v54 = vsub.s32 0, %v53
    %v55 = vrot.slane %v50, %v54
    %v57 = vmul.f32 %v49, %v55
    %v58 = vld [vmem:[%s3] sm:$0x1]
    %v60 = vlaneseq
    %v61 = vshrl.u32 %v60, 7
    %v62 = vsub.s32 0, %v61
    %v63 = vrot.slane %v58, %v62
    %v65 = vadd.f32 %v57, %v63
    %s66 = sld [smem:[#allocation5]]
    %vm67 = vcmp.ge.f32.partialorder %v65, 0.0
    %v68 = vstv %s66
    %v69 = vmul.f32 %v68, %v65
    %v70 = vsel %vm67, %v65, %v69
    %v71 = vld [vmem:[#allocation2] sm:$0xff]
    %v72 = vld [vmem:[#allocation2 + $0x8] sm:$0xff]
    %v73 = vld [vmem:[#allocation2 + $0x10] sm:$0xff]
    %v74 = vld [vmem:[#allocation2 + $0x18] sm:$0xff]
    %v75 = vld [vmem:[#allocation2 + $0x20] sm:$0xff]
    %v76 = vld [vmem:[#allocation2 + $0x28] sm:$0xff]
    %v77 = vld [vmem:[#allocation2 + $0x30] sm:$0xff]
    %v78 = vld [vmem:[#allocation2 + $0x38] sm:$0xff]
    %v79 = vld [vmem:[#allocation2 + $0x40] sm:$0xff]
    %v80 = vld [vmem:[#allocation2 + $0x48] sm:$0xff]
    %v81 = vld [vmem:[#allocation2 + $0x50] sm:$0xff]
    %v82 = vld [vmem:[#allocation2 + $0x58] sm:$0xff]
    %v83 = vld [vmem:[#allocation2 + $0x60] sm:$0xff]
    %v84 = vld [vmem:[#allocation2 + $0x68] sm:$0xff]
    %v85 = vld [vmem:[#allocation2 + $0x70] sm:$0xff]
    %v86 = vld [vmem:[#allocation2 + $0x78] sm:$0xff]
    %87 = vmatprep.subr.mxu0 0.0
    %88 = vmatpush1.msra.mxu0 %v86
    %89 = vmatprep.subr.mxu0 0.0
    %90 = vmatpush1.msra.mxu0 %v85
    %91 = vmatprep.subr.mxu0 0.0
    %92 = vmatpush1.msra.mxu0 %v84
    %93 = vmatprep.subr.mxu0 0.0
    %94 = vmatpush1.msra.mxu0 %v83
    %95 = vmatprep.subr.mxu0 0.0
    %96 = vmatpush1.msra.mxu0 %v82
    %97 = vmatprep.subr.mxu0 0.0
    %98 = vmatpush1.msra.mxu0 %v81
    %99 = vmatprep.subr.mxu0 0.0
    %100 = vmatpush1.msra.mxu0 %v80
    %101 = vmatprep.subr.mxu0 0.0
    %102 = vmatpush1.msra.mxu0 %v79
    %103 = vmatprep.subr.mxu0 0.0
    %104 = vmatpush1.msra.mxu0 %v78
    %105 = vmatprep.subr.mxu0 0.0
    %106 = vmatpush1.msra.mxu0 %v77
    %107 = vmatprep.subr.mxu0 0.0
    %108 = vmatpush1.msra.mxu0 %v76
    %109 = vmatprep.subr.mxu0 0.0
    %110 = vmatpush1.msra.mxu0 %v75
    %111 = vmatprep.subr.mxu0 0.0
    %112 = vmatpush1.msra.mxu0 %v74
    %113 = vmatprep.subr.mxu0 0.0
    %114 = vmatpush1.msra.mxu0 %v73
    %115 = vmatprep.subr.mxu0 0.0
    %116 = vmatpush1.msra.mxu0 %v72
    %117 = vmatprep.subr.mxu0 0.0
    %118 = vmatpush1.msra.mxu0 %v71
    %119 = vmatprep.subr.mxu0 0.0
    %120 = vmatpush2.msra.mxu0 0.0
    %121 = vmatprep.subr.mxu0 0.0
    %122 = vmatpush2.msra.mxu0 0.0
    %123 = vmatprep.subr.mxu0 0.0
    %124 = vmatpush2.msra.mxu0 0.0
    %125 = vmatprep.subr.mxu0 0.0
    %126 = vmatpush2.msra.mxu0 0.0
    %127 = vmatprep.subr.mxu0 0.0
    %128 = vmatpush2.msra.mxu0 0.0
    %129 = vmatprep.subr.mxu0 0.0
    %130 = vmatpush2.msra.mxu0 0.0
    %131 = vmatprep.subr.mxu0 0.0
    %132 = vmatpush2.msra.mxu0 0.0
    %133 = vmatprep.subr.mxu0 0.0
    %134 = vmatpush2.msra.mxu0 0.0
    %135 = vmatprep.subr.mxu0 0.0
    %136 = vmatpush2.msra.mxu0 0.0
    %137 = vmatprep.subr.mxu0 0.0
    %138 = vmatpush2.msra.mxu0 0.0
    %139 = vmatprep.subr.mxu0 0.0
    %140 = vmatpush2.msra.mxu0 0.0
    %141 = vmatprep.subr.mxu0 0.0
    %142 = vmatpush2.msra.mxu0 0.0
    %143 = vmatprep.subr.mxu0 0.0
    %144 = vmatpush2.msra.mxu0 0.0
    %145 = vmatprep.subr.mxu0 0.0
    %146 = vmatpush2.msra.mxu0 0.0
    %147 = vmatprep.subr.mxu0 0.0
    %148 = vmatpush2.msra.mxu0 0.0
    %149 = vmatprep.subr.mxu0 0.0
    %150 = vmatpush2.msra.mxu0 0.0
    %151 = vmatprep.mubr.f32.mxu0 0.0
    %152 = vmatmul.mubr.f32.gmra.mxu0 %v70
    %v153 = vpop.f32.mrf.mxu0
    %v154 = vadd.f32 0.0, %v153
    %v155 = vpop.f32.mrf.mxu0
    %156 = vdwg.mxu0
    %v157 = vrot.slane %v154, 4
    %v158 = vadd.f32 %v154, %v157
    %v159 = vrot.slane %v158, 2
    %v160 = vadd.f32 %v158, %v159
    %v161 = vrot.slane %v160, 1
    %v162 = vadd.f32 %v160, %v161
    %v163 = vmul.f32 %v154, %v154
    %v164 = vrot.slane %v163, 4
    %v165 = vadd.f32 %v163, %v164
    %v166 = vrot.slane %v165, 2
    %v167 = vadd.f32 %v165, %v166
    %v168 = vrot.slane %v167, 1
    %v169 = vadd.f32 %v167, %v168
    %vm170 = vcmask 1040384
    %v171 = vsel %vm170, %v162, %v169
    %172 = vst [vmem:[%s6] sm:$0x3] %v171
    %173 = vst [vmem:[%s5] sm:$0xff] %v154
    // Predicated region
    $region30: #{mlp_forward.4} parent=1 // pred_check
      _
    $region31: #{mlp_forward.4} parent=1 // pred_check_branch
      %175 = sbr.rel (0) target = $region33
    $region32: #{mlp_forward.4} parent=1 // pred_region
      _
    $region33: #{mlp_forward.4} parent=1 // pred_fallthru
      _
    // Predicated region
    $region34: #{mlp_forward.4} parent=1 // pred_check
      _
    $region35: #{mlp_forward.4} parent=1 // pred_check_branch
      %177 = sbr.rel (0) target = $region37
    $region36: #{mlp_forward.4} parent=1 // pred_region
      _
    $region37: #{mlp_forward.4} parent=1 // pred_fallthru
      _
    // Predicated region
    $region38: #{mlp_forward.4} parent=1 // pred_check
      _
    $region39: #{mlp_forward.4} parent=1 // pred_check_branch
      %179 = sbr.rel (0) target = $region41
    $region40: #{mlp_forward.4} parent=1 // pred_region
      _
    $region41: #{mlp_forward.4} parent=1 // pred_fallthru
      _
    // Predicated region
    $region42: #{mlp_forward.4} parent=1 // pred_check
      _
    $region43: #{mlp_forward.4} parent=1 // pred_check_branch
      %181 = sbr.rel (0) target = $region45
    $region44: #{mlp_forward.4} parent=1 // pred_region
      _
    $region45: #{mlp_forward.4} parent=1 // pred_fallthru
      _
    %182 = vsyncpa [#allocation3], 1
    %183 = vsyncpa [#allocation4], 1

// kernel: mlp_forward.3
$region0: #{mlp_forward.3}
  #allocation0 [shape = 'u32[]', space=smem, size = 0x4, offset = 0x4, fixed_abs, tag = 'smem constant byte address 0x4 - core index']
  #allocation1 [shape = 'u32[144,128]{1,0:T(1,128)}', space=vmem, size = 0x12000, scoped, tag = 'internal scratch']
  %s0 = inlined_call_operand.hbm [shape: f32[8,32], index: 0, kind: input, shape index: {}]
  %s1 = inlined_call_operand.hbm [shape: f32[32,256], index: 1, kind: input, shape index: {}]
  %s2 = inlined_call_operand.hbm [shape: f32[1,128], index: 2, kind: input, shape index: {}]
  %s3 = inlined_call_operand.vmem [shape: f32[8,128], index: 3, kind: output, shape index: {0}]
  %s4 = inlined_call_operand.vmem [shape: f32[8,128], index: 4, kind: output, shape index: {1}]
  %s5 = inlined_call_operand.vmem [shape: f32[1,2,128], index: 5, kind: output, shape index: {2}]
  %6 = xla_tuple %s3, %s4, %s5
  %s7 = sld [smem:[#allocation0]]
  $region50: #{mlp_forward.3} parent=0
    _
  %s9 = ssub.s32 1, %s7
  %s10 = scalar_select 0, %s9, %s7
  $region1: #{mlp_forward.3} parent=0
    #allocation2 [shape = 'u8[4096]{0}', space=vmem, size = 0x1000, scoped, tag = 'input window, operand 0, single buffered']
    #allocation3 [shape = 's32[1]{0}', space=sflag, size = 0x4, scoped, tag = 'scoped memory for mlp_forward.3']
    #allocation4 [shape = 'u8[32768]{0}', space=vmem, size = 0x8000, scoped, tag = 'input window, operand 1, single buffered']
    #allocation5 [shape = 's32[1]{0}', space=sflag, size = 0x4, scoped, tag = 'scoped memory for mlp_forward.3']
    #allocation6 [shape = 'u8[512]{0}', space=vmem, size = 0x400, scoped, tag = 'input window, operand 2, single buffered']
    %11 = vsyncpa [#allocation3], 0
    %12 = vsyncpa [#allocation5], 0
    // Predicated region
    $region2: #{mlp_forward.3} parent=1 // pred_check
      _
    $region3: #{mlp_forward.3} parent=1 // pred_check_branch
      %14 = sbr.rel (0) target = $region5
    $region4: #{mlp_forward.3} parent=1 // pred_region
      %s16 = ssub.s32 128, 128
      %17 = vsyncadd [#allocation3], %s16
      %s19 = sshll.u32 [#allocation2], 4
      %s20 = int_to_ptr.vmem [resolvable:$true] %s19
      %22 = dma.hbm_to_vmem [thread:$0]  %s0, 128, %s20, [#allocation3]
    $region5: #{mlp_forward.3} parent=1 // pred_fallthru
      _
    // Predicated region
    $region6: #{mlp_forward.3} parent=1 // pred_check
      _
    $region7: #{mlp_forward.3} parent=1 // pred_check_branch
      %24 = sbr.rel (0) target = $region9
    $region8: #{mlp_forward.3} parent=1 // pred_region
      %s26 = ssub.s32 1024, 1024
      %27 = vsyncadd [#allocation5], %s26
      %s28 = sshll.u32 [#allocation4], 4
      %s29 = int_to_ptr.vmem [resolvable:$true] %s28
      %34 = dma.hbm_to_vmem [thread:$0]  %s1, 1024, %s29, [#allocation5], 256, 256, 16
    $region9: #{mlp_forward.3} parent=1 // pred_fallthru
      _
    // Predicated region
    $region10: #{mlp_forward.3} parent=1 // pred_check
      _
    $region11: #{mlp_forward.3} parent=1 // pred_check_branch
      %36 = sbr.rel (0) target = $region13
    $region12: #{mlp_forward.3} parent=1 // pred_region
      %s38 = ssub.s32 16, 16
      %39 = vsyncadd [#allocation5], %s38
      %s41 = sshll.u32 [#allocation6], 4
      %s42 = int_to_ptr.vmem [resolvable:$true] %s41
      %44 = dma.hbm_to_vmem [thread:$0]  %s2, 16, %s42, [#allocation5]
    $region13: #{mlp_forward.3} parent=1 // pred_fallthru
      _
    // Predicated region
    $region14: #{mlp_forward.3} parent=1 // pred_check
      _
    $region15: #{mlp_forward.3} parent=1 // pred_check_branch
      %46 = sbr.rel (0) target = $region17
    $region16: #{mlp_forward.3} parent=1 // pred_region
      %47 = dma.done [#allocation3], 128
    $region17: #{mlp_forward.3} parent=1 // pred_fallthru
      _
    // Predicated region
    $region18: #{mlp_forward.3} parent=1 // pred_check
      _
    $region19: #{mlp_forward.3} parent=1 // pred_check_branch
      %49 = sbr.rel (0) target = $region21
    $region20: #{mlp_forward.3} parent=1 // pred_region
      %50 = dma.done [#allocation5], 1024
    $region21: #{mlp_forward.3} parent=1 // pred_fallthru
      _
    // Predicated region
    $region22: #{mlp_forward.3} parent=1 // pred_check
      _
    $region23: #{mlp_forward.3} parent=1 // pred_check_branch
      %52 = sbr.rel (0) target = $region25
    $region24: #{mlp_forward.3} parent=1 // pred_region
      %53 = dma.done [#allocation5], 16
    $region25: #{mlp_forward.3} parent=1 // pred_fallthru
      _
    %v54 = vld [vmem:[#allocation2] sm:$0xff]
    %v55 = vld [vmem:[#allocation4] sm:$0xff]
    %v56 = vld [vmem:[#allocation4 + $0x8] sm:$0xff]
    %v57 = vld [vmem:[#allocation4 + $0x10] sm:$0xff]
    %v58 = vld [vmem:[#allocation4 + $0x18] sm:$0xff]
    %v59 = vld [vmem:[#allocation4 + $0x20] sm:$0xff]
    %v60 = vld [vmem:[#allocation4 + $0x28] sm:$0xff]
    %v61 = vld [vmem:[#allocation4 + $0x30] sm:$0xff]
    %v62 = vld [vmem:[#allocation4 + $0x38] sm:$0xff]
    %vm63 = vcmask 261120
    %v65 = vsel %vm63, %v54, 0
    %67 = vmatprep.subr.mxu0 0.0
    %68 = vmatpush1.msra.mxu0 0.0
    %69 = vmatprep.subr.mxu0 0.0
    %70 = vmatpush1.msra.mxu0 0.0
    %71 = vmatprep.subr.mxu0 0.0
    %72 = vmatpush1.msra.mxu0 0.0
    %73 = vmatprep.subr.mxu0 0.0
    %74 = vmatpush1.msra.mxu0 0.0
    %75 = vmatprep.subr.mxu0 0.0
    %76 = vmatpush1.msra.mxu0 0.0
    %77 = vmatprep.subr.mxu0 0.0
    %78 = vmatpush1.msra.mxu0 0.0
    %79 = vmatprep.subr.mxu0 0.0
    %80 = vmatpush1.msra.mxu0 0.0
    %81 = vmatprep.subr.mxu0 0.0
    %82 = vmatpush1.msra.mxu0 0.0
    %83 = vmatprep.subr.mxu0 0.0
    %84 = vmatpush1.msra.mxu0 0.0
    %85 = vmatprep.subr.mxu0 0.0
    %86 = vmatpush1.msra.mxu0 0.0
    %87 = vmatprep.subr.mxu0 0.0
    %88 = vmatpush1.msra.mxu0 0.0
    %89 = vmatprep.subr.mxu0 0.0
    %90 = vmatpush1.msra.mxu0 0.0
    %91 = vmatprep.subr.mxu0 %v62
    %92 = vmatpush1.msra.mxu0 %v61
    %93 = vmatprep.subr.mxu0 %v60
    %94 = vmatpush1.msra.mxu0 %v59
    %95 = vmatprep.subr.mxu0 %v58
    %96 = vmatpush1.msra.mxu0 %v57
    %97 = vmatprep.subr.mxu0 %v56
    %98 = vmatpush1.msra.mxu0 %v55
    %99 = vmatprep.subr.mxu0 0.0
    %100 = vmatpush2.msra.mxu0 0.0
    %101 = vmatprep.subr.mxu0 0.0
    %102 = vmatpush2.msra.mxu0 0.0
    %103 = vmatprep.subr.mxu0 0.0
    %104 = vmatpush2.msra.mxu0 0.0
    %105 = vmatprep.subr.mxu0 0.0
    %106 = vmatpush2.msra.mxu0 0.0
    %107 = vmatprep.subr.mxu0 0.0
    %108 = vmatpush2.msra.mxu0 0.0
    %109 = vmatprep.subr.mxu0 0.0
    %110 = vmatpush2.msra.mxu0 0.0
    %111 = vmatprep.subr.mxu0 0.0
    %112 = vmatpush2.msra.mxu0 0.0
    %113 = vmatprep.subr.mxu0 0.0
    %114 = vmatpush2.msra.mxu0 0.0
    %115 = vmatprep.subr.mxu0 0.0
    %116 = vmatpush2.msra.mxu0 0.0
    %117 = vmatprep.subr.mxu0 0.0
    %118 = vmatpush2.msra.mxu0 0.0
    %119 = vmatprep.subr.mxu0 0.0
    %120 = vmatpush2.msra.mxu0 0.0
    %121 = vmatprep.subr.mxu0 0.0
    %122 = vmatpush2.msra.mxu0 0.0
    %123 = vmatprep.subr.mxu0 0.0
    %124 = vmatpush2.msra.mxu0 0.0
    %125 = vmatprep.subr.mxu0 0.0
    %126 = vmatpush2.msra.mxu0 0.0
    %127 = vmatprep.subr.mxu0 0.0
    %128 = vmatpush2.msra.mxu0 0.0
    %129 = vmatprep.subr.mxu0 0.0
    %130 = vmatpush2.msra.mxu0 0.0
    %131 = vmatprep.mubr.f32.mxu0 0.0
    %132 = vmatmul.mubr.f32.gmra.mxu0 %v65
    %v133 = vpop.f32.mrf.mxu0
    %v134 = vadd.f32 0.0, %v133
    %v135 = vpop.f32.mrf.mxu0
    %v136 = vadd.f32 0.0, %v135
    %137 = vdwg.mxu0
    %v138 = vld [vmem:[#allocation6] sm:$0x1]
    %v140 = vlaneseq
    %v141 = vshrl.u32 %v140, 7
    %v142 = vsub.s32 0, %v141
    %v143 = vrot.slane %v138, %v142
    %v145 = vadd.f32 %v136, %v143
    %146 = vst [vmem:[%s4] sm:$0xff] %v145
    %v147 = vrot.slane %v134, 4
    %v148 = vadd.f32 %v134, %v147
    %v149 = vrot.slane %v148, 2
    %v150 = vadd.f32 %v148, %v149
    %v151 = vrot.slane %v150, 1
    %v152 = vadd.f32 %v150, %v151
    %v153 = vmul.f32 %v134, %v134
    %v154 = vrot.slane %v153, 4
    %v155 = vadd.f32 %v153, %v154
    %v156 = vrot.slane %v155, 2
    %v157 = vadd.f32 %v155, %v156
    %v158 = vrot.slane %v157, 1
    %v159 = vadd.f32 %v157, %v158
    %vm160 = vcmask 1040384
    %v161 = vsel %vm160, %v152, %v159
    %162 = vst [vmem:[%s5] sm:$0x3] %v161
    %163 = vst [vmem:[%s3] sm:$0xff] %v134
    // Predicated region
    $region26: #{mlp_forward.3} parent=1 // pred_check
      _
    $region27: #{mlp_forward.3} parent=1 // pred_check_branch
      %165 = sbr.rel (0) target = $region29
    $region28: #{mlp_forward.3} parent=1 // pred_region
      _
    $region29: #{mlp_forward.3} parent=1 // pred_fallthru
      _
    // Predicated region
    $region30: #{mlp_forward.3} parent=1 // pred_check
      _
    $region31: #{mlp_forward.3} parent=1 // pred_check_branch
      %167 = sbr.rel (0) target = $region33
    $region32: #{mlp_forward.3} parent=1 // pred_region
      _
    $region33: #{mlp_forward.3} parent=1 // pred_fallthru
      _
    // Predicated region
    $region34: #{mlp_forward.3} parent=1 // pred_check
      _
    $region35: #{mlp_forward.3} parent=1 // pred_check_branch
      %169 = sbr.rel (0) target = $region37
    $region36: #{mlp_forward.3} parent=1 // pred_region
      _
    $region37: #{mlp_forward.3} parent=1 // pred_fallthru
      _
    // Predicated region
    $region38: #{mlp_forward.3} parent=1 // pred_check
      _
    $region39: #{mlp_forward.3} parent=1 // pred_check_branch
      %171 = sbr.rel (0) target = $region41
    $region40: #{mlp_forward.3} parent=1 // pred_region
      _
    $region41: #{mlp_forward.3} parent=1 // pred_fallthru
      _
    // Predicated region
    $region42: #{mlp_forward.3} parent=1 // pred_check
      _
    $region43: #{mlp_forward.3} parent=1 // pred_check_branch
      %173 = sbr.rel (0) target = $region45
    $region44: #{mlp_forward.3} parent=1 // pred_region
      _
    $region45: #{mlp_forward.3} parent=1 // pred_fallthru
      _
    // Predicated region
    $region46: #{mlp_forward.3} parent=1 // pred_check
      _
    $region47: #{mlp_forward.3} parent=1 // pred_check_branch
      %175 = sbr.rel (0) target = $region49
    $region48: #{mlp_forward.3} parent=1 // pred_region
      _
    $region49: #{mlp_forward.3} parent=1 // pred_fallthru
      _
    %176 = vsyncpa [#allocation3], 1
    %177 = vsyncpa [#allocation5], 1

</llo_original>
